<compile_context>
chip_gen: v7x
topology: tpu7x:2x2x1
jax: 0.10.0
libtpu: 0.0.40
codegen_flags: <defaults>
</compile_context>

<pallas_src>
import jax
import jax.numpy as jnp
from jax import lax
from jax.experimental import pallas as pl
from jax.experimental.pallas import tpu as pltpu


# ---------------------------------------------------------------------------
# Parameter setup (plain JAX glue, weight-only)
# ---------------------------------------------------------------------------
def _interp_linear(w, out_len):
    """1-D linear interpolation of taps, matching F.interpolate(bilinear,
    align_corners=True) applied to a (C, 1, K, 1) weight -> (C, 1, out_len, 1)."""
    C, K = w.shape
    if K == 1:
        return jnp.broadcast_to(w, (C, out_len))
    src = jnp.arange(out_len, dtype=jnp.float32) * (K - 1) / (out_len - 1)
    lo = jnp.clip(jnp.floor(src).astype(jnp.int32), 0, K - 2)
    frac = src - lo.astype(jnp.float32)
    hi = lo + 1
    return w[:, lo] * (1.0 - frac)[None, :] + w[:, hi] * frac[None, :]


def _banded_toeplitz(taps, n, pad):
    """T[c, i, j] = taps[c, j - i + pad] if valid else 0   (shape (C, n, n)).
    T @ x implements a depthwise 1-D cross-correlation with zero padding."""
    C, K = taps.shape
    i = jnp.arange(n)[:, None]
    j = jnp.arange(n)[None, :]
    t = j - i + pad
    valid = (t >= 0) & (t < K)
    T = jnp.take(taps, jnp.clip(t, 0, K - 1), axis=1)
    return jnp.where(valid[None], T, 0.0)


def init_params(key, dim, kernel_size, ratio=0.5):
    ratio = 0.0 if ratio < 0 else (1.0 if ratio > 1 else ratio)
    global_dim = round(ratio * dim)
    local_dim = dim - global_dim
    ks = jax.random.split(key, 12)
    s = 0.1
    p = {
        "dim": dim, "kernel_size": kernel_size,
        "local_dim": local_dim, "global_dim": global_dim,
        "w0": jax.random.normal(ks[0], (dim, 3, 3), jnp.float32) * s,   # conv0 dw 3x3
        "b0": jax.random.normal(ks[1], (dim,), jnp.float32) * s,
        "w1": jax.random.normal(ks[10], (dim, dim), jnp.float32) * s,   # conv1 1x1
        "b1": jax.random.normal(ks[11], (dim,), jnp.float32) * s,
    }
    if local_dim > 0:  # SpatialConv2d(local_dim, 3), hidden_ratio=1 -> depthwise
        p["lh_w"] = jax.random.normal(ks[2], (local_dim, 3), jnp.float32) * s
        p["lh_b"] = jax.random.normal(ks[3], (local_dim,), jnp.float32) * s
        p["lw_w"] = jax.random.normal(ks[4], (local_dim, 3), jnp.float32) * s
        p["lw_b"] = jax.random.normal(ks[5], (local_dim,), jnp.float32) * s
    if global_dim > 0:  # OversizeConv2d(global_dim, kernel_size)
        p["gh_w"] = jax.random.normal(ks[6], (global_dim, kernel_size), jnp.float32) * s
        p["gh_b"] = jax.random.normal(ks[7], (global_dim,), jnp.float32) * s
        p["gw_w"] = jax.random.normal(ks[8], (global_dim, kernel_size), jnp.float32) * s
        p["gw_b"] = jax.random.normal(ks[9], (global_dim,), jnp.float32) * s
    return p


def build_lkc_operators(params, H, W):
    """Fold conv0 + (local|global) separable convs + their biases into a single
    per-channel left operator L_cat (C, H, 3H), a right operator TW^T (C, W, W)
    and a (C, H, W) pre-bias map.  Weight-only work — hoist / cache this."""
    Cl, Cg = params["local_dim"], params["global_dim"]
    w0 = params["w0"]                                           # (C, 3, 3)

    TH_l, TWT_l, BH_l, BW_l = [], [], [], []
    if Cl > 0:  # local: 3-tap vertical / horizontal, padding 1
        TH_l.append(_banded_toeplitz(params["lh_w"], H, 1))
        TWT_l.append(jnp.swapaxes(_banded_toeplitz(params["lw_w"], W, 1), 1, 2))
        BH_l.append(params["lh_b"]); BW_l.append(params["lw_b"])
    if Cg > 0:  # global: (2H-1)/(2W-1)-tap, padding (H-1)/(W-1), interpolated taps
        ghk = _interp_linear(params["gh_w"], 2 * H - 1)
        gwk = _interp_linear(params["gw_w"], 2 * W - 1)
        TH_l.append(_banded_toeplitz(ghk, H, H - 1))
        TWT_l.append(jnp.swapaxes(_banded_toeplitz(gwk, W, W - 1), 1, 2))
        BH_l.append(params["gh_b"]); BW_l.append(params["gw_b"])
    TH = jnp.concatenate(TH_l, 0)       # (C, H, H)  vertical operator
    TWT = jnp.concatenate(TWT_l, 0)     # (C, W, W)  horizontal operator (pre-T)
    BH = jnp.concatenate(BH_l, 0)       # (C,)
    BW = jnp.concatenate(BW_l, 0)       # (C,)

    # conv0 column q -> vertical 3-tap Toeplitz A_q; the horizontal +-1 column
    # shift S_q is applied to x *in the kernel*, so only the left operators are
    # folded here (column-concatenated over q).
    L_cols = []
    for q in range(3):
        Aq = _banded_toeplitz(w0[:, :, q], H, 1)                # (C, H, H)
        L_cols.append(jnp.einsum('cij,cjk->cik', TH, Aq))       # TH @ A_q
    L_cat = jnp.concatenate(L_cols, axis=2)                     # (C, H, 3H)

    # bias propagation:
    #   z = TH @ (conv0_lin(x) + b0) @ TW^T + bh*(1 @ TW^T) + bw
    ones_hw = jnp.ones((H, W), jnp.float32)
    th1 = jnp.einsum('chj,jw->chw', TH, ones_hw)
    b0_term = params["b0"][:, None, None] * jnp.einsum('chw,cwv->chv', th1, TWT)
    bh_term = BH[:, None, None] * jnp.einsum('hw,cwv->chv', ones_hw, TWT)
    bw_term = BW[:, None, None] * ones_hw[None]
    pre_bias = b0_term + bh_term + bw_term                      # (C, H, W)
    return {"L": L_cat, "TWT": TWT, "pre_bias": pre_bias}


def _default_vmem_limit():
    # 3/4 of physical VMEM: ~96 MiB on v5e/v6e, ~48 MiB on v7x (headroom for
    # Mosaic scratch).  Falls back to 48 MiB if the query is unavailable.
    try:
        cap = pltpu.get_tpu_info().vmem_capacity_bytes
        return int(cap) * 3 // 4
    except Exception:
        return 48 * 1024 * 1024


# ---------------------------------------------------------------------------
# Pallas kernels
# ---------------------------------------------------------------------------
def _lkc_spatial_kernel(x_ref, L_ref, TWT_ref, pb_ref, z_ref):
    # x_ref  : (Ct, H, W)     one batch element, one channel block
    # L_ref  : (Ct, H, 3H)    column-concat of the 3 left operators (TH @ A_q)
    # TWT_ref: (Ct, W, W)     single right operator TW^T
    # pb_ref : (Ct, H, W)     precomputed propagated biases (b0 / bh / bw)
    # z_ref  : (Ct, H, W)     depthwise output (input of conv1), compute dtype
    f32 = jnp.float32
    x = x_ref[...]
    zc = jnp.zeros((x.shape[0], x.shape[1], 1), x.dtype)
    # conv0's +-1 column shifts applied to x directly (zero-padded, matching
    # the conv's zero padding), then stacked along rows in q order 0,1,2 so the
    # single (H,3H)@(3H,W) matmul equals sum_q L_q @ (x @ S_q).
    x_r = jnp.concatenate([zc, x[:, :, :-1]], axis=2)   # x @ S_0  (cols <- j-1)
    x_l = jnp.concatenate([x[:, :, 1:], zc], axis=2)    # x @ S_2  (cols <- j+1)
    xs = jnp.concatenate([x_r, x, x_l], axis=1)          # (Ct, 3H, W)

    # channel-batched matmuls: batch dim 0, contract lhs dim 2 with rhs dim 1
    dn = (((2,), (1,)), ((0,), (0,)))
    t = lax.dot_general(L_ref[...], xs, dn, preferred_element_type=f32)
    z = lax.dot_general(t.astype(x.dtype), TWT_ref[...], dn,
                        preferred_element_type=f32)
    z_ref[...] = (pb_ref[...].astype(f32) + z).astype(z_ref.dtype)


def _lkc_pointwise_kernel(z_ref, w1_ref, b1_ref, o_ref):
    # conv1 (1x1 conv) as a lane-dense MXU matmul per (batch, hw-tile):
    # z_ref : (C, hw_blk) ; w1_ref : (C, C) VMEM ; b1_ref : (C, 1) VMEM
    f32 = jnp.float32
    out = jnp.dot(w1_ref[...], z_ref[...], preferred_element_type=f32)
    o_ref[...] = (out + b1_ref[...].astype(f32)).astype(o_ref.dtype)


def lkc_forward(x, params, *, operators=None, compute_dtype=jnp.float32,
                channel_block=None, hw_block=None, vmem_limit_bytes=None):
    B, C, H, W = x.shape
    assert C == params["local_dim"] + params["global_dim"]
    HW = H * W
    ct = C if channel_block is None else channel_block
    assert C % ct == 0, "channel_block must divide C"
    hwb = HW if hw_block is None else hw_block
    assert HW % hwb == 0, "hw_block must divide H*W"

    if operators is None:       # weight-only folding; hoist/cache across calls
        operators = build_lkc_operators(params, H, W)
    if vmem_limit_bytes is None:
        vmem_limit_bytes = _default_vmem_limit()

    cd = compute_dtype
    xk = x.astype(cd)
    Lk = operators["L"].astype(cd)          # (C, H, 3H)
    Tk = operators["TWT"].astype(cd)        # (C, W, W)
    pb = operators["pre_bias"]              # (C, H, W), kept f32

    # ---- stage 1: depthwise (conv0 + local/global separable convs) ---------
    # Grid is (channel blocks, batch) with batch INNERMOST: the L/TWT/pre_bias
    # index maps only depend on the channel-block index, so Pallas skips their
    # re-DMA across consecutive batch steps (fetched once per channel block).
    # They could also be single-buffered via pipeline_mode=pl.Buffered(1) to
    # halve their VMEM footprint on v7x; left at the default here.
    z = pl.pallas_call(
        _lkc_spatial_kernel,
        out_shape=jax.ShapeDtypeStruct((B, C, H, W), cd),
        grid_spec=pltpu.PrefetchScalarGridSpec(
            num_scalar_prefetch=0,
            grid=(C // ct, B),
            in_specs=[
                pl.BlockSpec((None, ct, H, W), lambda c, b: (b, c, 0, 0)),   # x
                pl.BlockSpec((ct, H, 3 * H), lambda c, b: (c, 0, 0)),        # L_cat
                pl.BlockSpec((ct, W, W), lambda c, b: (c, 0, 0)),            # TW^T
                pl.BlockSpec((ct, H, W), lambda c, b: (c, 0, 0)),            # pre_bias
            ],
            out_specs=pl.BlockSpec((None, ct, H, W), lambda c, b: (b, c, 0, 0)),
        ),
        compiler_params=pltpu.CompilerParams(
            dimension_semantics=("parallel", "parallel"),
            vmem_limit_bytes=vmem_limit_bytes,
        ),
    )(xk, Lk, Tk, pb)

    # free row-major metadata reshape (already in compute dtype -> no cast pass)
    zf = z.reshape(B, C, HW)

    # ---- stage 2: conv1 (1x1 conv), HW axis tiled lane-dense ----------------
    out = pl.pallas_call(
        _lkc_pointwise_kernel,
        out_shape=jax.ShapeDtypeStruct((B, C, HW), x.dtype),
        grid_spec=pltpu.PrefetchScalarGridSpec(
            num_scalar_prefetch=0,
            grid=(B, HW // hwb),
            in_specs=[
                pl.BlockSpec((None, C, hwb), lambda b, h: (b, 0, h)),        # z
                pl.BlockSpec((C, C), lambda b, h: (0, 0)),                   # w1 (VMEM)
                pl.BlockSpec((C, 1), lambda b, h: (0, 0)),                   # b1 (VMEM)
            ],
            out_specs=pl.BlockSpec((None, C, hwb), lambda b, h: (b, 0, h)),
        ),
        compiler_params=pltpu.CompilerParams(
            dimension_semantics=("parallel", "parallel"),
            vmem_limit_bytes=vmem_limit_bytes,
        ),
    )(zf, params["w1"].astype(cd), params["b1"].reshape(C, 1))

    return out.reshape(B, C, H, W)


# ---------------------------------------------------------------------------
# Independent reference (plain XLA convs, mirrors the PyTorch module)
# ---------------------------------------------------------------------------
def lkc_reference(x, params):
    B, C, H, W = x.shape
    dn = ("NCHW", "OIHW", "NCHW")
    prec = lax.Precision.HIGHEST

    def dwconv(inp, w, b, padding):
        g = inp.shape[1]
        out = lax.conv_general_dilated(inp, w, (1, 1), padding,
                                       dimension_numbers=dn,
                                       feature_group_count=g, precision=prec)
        return out + b[None, :, None, None]

    attn = dwconv(x, params["w0"][:, None, :, :], params["b0"], ((1, 1), (1, 1)))
    Cl, Cg = params["local_dim"], params["global_dim"]
    outs = []
    if Cl > 0:
        y = dwconv(attn[:, :Cl], params["lh_w"][:, None, :, None],
                   params["lh_b"], ((1, 1), (0, 0)))
        y = dwconv(y, params["lw_w"][:, None, None, :],
                   params["lw_b"], ((0, 0), (1, 1)))
        outs.append(y)
    if Cg > 0:
        ghk = _interp_linear(params["gh_w"], 2 * H - 1)
        gwk = _interp_linear(params["gw_w"], 2 * W - 1)
        y = dwconv(attn[:, Cl:], ghk[:, None, :, None],
                   params["gh_b"], ((H - 1, H - 1), (0, 0)))
        y = dwconv(y, gwk[:, None, None, :],
                   params["gw_b"], ((0, 0), (W - 1, W - 1)))
        outs.append(y)
    attn = outs[0] if len(outs) == 1 else jnp.concatenate(outs, axis=1)
    out = lax.conv_general_dilated(attn, params["w1"][:, :, None, None], (1, 1),
                                   ((0, 0), (0, 0)), dimension_numbers=dn,
                                   precision=prec)
    return out + params["b1"][None, :, None, None]


if __name__ == "__main__":
    key = jax.random.PRNGKey(0)
    kp, kx = jax.random.split(key)
    B, dim, H, W = 2, 4, 16, 16
    kernel_size = 7          # OversizeConv2d base kernel size
    params = init_params(kp, dim, kernel_size, ratio=0.5)
    x = jax.random.normal(kx, (B, dim, H, W), jnp.float32)

    # weight folding hoisted out of the forward and reused across calls/dtypes
    operators = build_lkc_operators(params, dim and H, W)
    ref = lkc_reference(x, params)

    # f32 path (tight check); channel_block / hw_block exercise the tiled grids.
    out = lkc_forward(x, params, operators=operators,
                      compute_dtype=jnp.float32, channel_block=2, hw_block=128)
    out = jax.block_until_ready(out)
    assert out.shape == (B, dim, H, W)
    if not jnp.allclose(out, ref, atol=1e-2, rtol=1e-2):
        raise AssertionError(
            f"f32 mismatch vs reference, max abs err = "
            f"{float(jnp.max(jnp.abs(out - ref)))}")

    # bf16 compute path (recommended default on v6e/v7x: 2x MXU, half DMA bytes;
    # accumulation stays f32).  Looser tolerance for bf16 operand rounding.
    out_bf16 = lkc_forward(x, params, operators=operators,
                           compute_dtype=jnp.bfloat16, channel_block=2,
                           hw_block=128)
    out_bf16 = jax.block_until_ready(out_bf16)
    if not jnp.allclose(out_bf16.astype(jnp.float32), ref, atol=5e-2, rtol=5e-2):
        raise AssertionError(
            f"bf16 mismatch vs reference, max abs err = "
            f"{float(jnp.max(jnp.abs(out_bf16 - ref)))}")

    print("KERNEL_OK")
</pallas_src>

<mosaic_0001>
module attributes {stable_mosaic.version = 11 : i64} {
  func.func @_lkc_spatial_kernel(%arg0: i32, %arg1: i32, %arg2: memref<1x2x16x16xf32, #tpu.memory_space<vmem>>, %arg3: memref<2x16x48xf32, #tpu.memory_space<vmem>>, %arg4: memref<2x16x16xf32, #tpu.memory_space<vmem>>, %arg5: memref<2x16x16xf32, #tpu.memory_space<vmem>>, %arg6: memref<1x2x16x16xf32, #tpu.memory_space<vmem>>) attributes {dimension_semantics = [#tpu.dimension_semantics<parallel>, #tpu.dimension_semantics<parallel>], iteration_bounds = array<i64: 2, 2>, scalar_prefetch = 0 : i64, scratch_operands = 0 : i64, tpu.core_type = #tpu.core_type<tc>, window_params = [{transform_indices = @transform_0, window_bounds = array<i64: 1, 2, 16, 16>}, {transform_indices = @transform_1, window_bounds = array<i64: 2, 16, 48>}, {transform_indices = @transform_2, window_bounds = array<i64: 2, 16, 16>}, {transform_indices = @transform_3, window_bounds = array<i64: 2, 16, 16>}, {transform_indices = @transform_4, window_bounds = array<i64: 1, 2, 16, 16>}]} {
    %c0 = arith.constant 0 : index
    %c0_0 = arith.constant 0 : index
    %c0_1 = arith.constant 0 : index
    %c0_2 = arith.constant 0 : index
    %0 = vector.load %arg2[%c0, %c0_0, %c0_1, %c0_2] : memref<1x2x16x16xf32, #tpu.memory_space<vmem>>, vector<1x2x16x16xf32>
    %1 = vector.shape_cast %0 : vector<1x2x16x16xf32> to vector<2x16x16xf32>
    %cst = arith.constant 0.000000e+00 : f32
    %2 = vector.broadcast %cst : f32 to vector<2x16x1xf32>
    %3 = vector.extract_strided_slice %1 {offsets = [0, 0, 0], sizes = [2, 16, 15], strides = [1, 1, 1]} : vector<2x16x16xf32> to vector<2x16x15xf32>
    %4 = tpu.concatenate %2, %3 in 2 : vector<2x16x1xf32>, vector<2x16x15xf32> -> vector<2x16x16xf32>
    %5 = vector.extract_strided_slice %1 {offsets = [0, 0, 1], sizes = [2, 16, 15], strides = [1, 1, 1]} : vector<2x16x16xf32> to vector<2x16x15xf32>
    %6 = tpu.concatenate %5, %2 in 2 : vector<2x16x15xf32>, vector<2x16x1xf32> -> vector<2x16x16xf32>
    %7 = tpu.concatenate %4, %1, %6 in 1 : vector<2x16x16xf32>, vector<2x16x16xf32>, vector<2x16x16xf32> -> vector<2x48x16xf32>
    %c0_3 = arith.constant 0 : index
    %c0_4 = arith.constant 0 : index
    %c0_5 = arith.constant 0 : index
    %8 = vector.load %arg3[%c0_3, %c0_4, %c0_5] : memref<2x16x48xf32, #tpu.memory_space<vmem>>, vector<2x16x48xf32>
    %cst_6 = arith.constant dense<0.000000e+00> : vector<2x16x16xf32>
    %9 = tpu.matmul %8, %7, %cst_6 {dimension_numbers = #tpu.dot_dimension_numbers<[2], [1], [1], [2], [0, 0, 0, 1, 1, 2], [0], [0]>} : vector<2x16x48xf32>, vector<2x48x16xf32>, vector<2x16x16xf32> -> vector<2x16x16xf32>
    %c0_7 = arith.constant 0 : index
    %c0_8 = arith.constant 0 : index
    %c0_9 = arith.constant 0 : index
    %10 = vector.load %arg4[%c0_7, %c0_8, %c0_9] : memref<2x16x16xf32, #tpu.memory_space<vmem>>, vector<2x16x16xf32>
    %cst_10 = arith.constant dense<0.000000e+00> : vector<2x16x16xf32>
    %11 = tpu.matmul %9, %10, %cst_10 {dimension_numbers = #tpu.dot_dimension_numbers<[2], [1], [1], [2], [0, 0, 0, 1, 1, 2], [0], [0]>} : vector<2x16x16xf32>, vector<2x16x16xf32>, vector<2x16x16xf32> -> vector<2x16x16xf32>
    %c0_11 = arith.constant 0 : index
    %c0_12 = arith.constant 0 : index
    %c0_13 = arith.constant 0 : index
    %12 = vector.load %arg5[%c0_11, %c0_12, %c0_13] : memref<2x16x16xf32, #tpu.memory_space<vmem>>, vector<2x16x16xf32>
    %13 = arith.addf %12, %11 : vector<2x16x16xf32>
    %c0_14 = arith.constant 0 : index
    %c0_15 = arith.constant 0 : index
    %c0_16 = arith.constant 0 : index
    %c0_17 = arith.constant 0 : index
    %14 = vector.load %arg6[%c0_14, %c0_15, %c0_16, %c0_17] : memref<1x2x16x16xf32, #tpu.memory_space<vmem>>, vector<1x2x16x16xf32>
    %15 = vector.shape_cast %14 : vector<1x2x16x16xf32> to vector<2x16x16xf32>
    %16 = vector.shape_cast %13 : vector<2x16x16xf32> to vector<1x2x16x16xf32>
    tpu.vector_store %arg6[%c0_14, %c0_15, %c0_16, %c0_17], %16 {strides = array<i32>} : memref<1x2x16x16xf32, #tpu.memory_space<vmem>>, vector<1x2x16x16xf32>,
    return
  }
  func.func @transform_0(%arg0: i32, %arg1: i32) -> (i32, i32, i32, i32) {
    %c0_i32 = arith.constant 0 : i32
    %c0_i32_0 = arith.constant 0 : i32
    %c0_i32_1 = arith.constant 0 : i32
    return %arg1, %arg0, %c0_i32, %c0_i32_0 : i32, i32, i32, i32
  }
  func.func @transform_1(%arg0: i32, %arg1: i32) -> (i32, i32, i32) {
    %c0_i32 = arith.constant 0 : i32
    %c0_i32_0 = arith.constant 0 : i32
    %c0_i32_1 = arith.constant 0 : i32
    return %arg0, %c0_i32, %c0_i32_0 : i32, i32, i32
  }
  func.func @transform_2(%arg0: i32, %arg1: i32) -> (i32, i32, i32) {
    %c0_i32 = arith.constant 0 : i32
    %c0_i32_0 = arith.constant 0 : i32
    %c0_i32_1 = arith.constant 0 : i32
    return %arg0, %c0_i32, %c0_i32_0 : i32, i32, i32
  }
  func.func @transform_3(%arg0: i32, %arg1: i32) -> (i32, i32, i32) {
    %c0_i32 = arith.constant 0 : i32
    %c0_i32_0 = arith.constant 0 : i32
    %c0_i32_1 = arith.constant 0 : i32
    return %arg0, %c0_i32, %c0_i32_0 : i32, i32, i32
  }
  func.func @transform_4(%arg0: i32, %arg1: i32) -> (i32, i32, i32, i32) {
    %c0_i32 = arith.constant 0 : i32
    %c0_i32_0 = arith.constant 0 : i32
    %c0_i32_1 = arith.constant 0 : i32
    return %arg1, %arg0, %c0_i32, %c0_i32_0 : i32, i32, i32, i32
  }
}

</mosaic_0001>

<llo_original>
// kernel: tpu_custom_call.1
$region0: #{tpu_custom_call.1}
  #allocation0 [shape = 'u32[]', space=smem, size = 0x4, offset = 0x4, fixed_abs, tag = 'smem constant byte address 0x4 - core index']
  #allocation1 [shape = 'u32[144,128]{1,0:T(1,128)}', space=vmem, size = 0x12000, scoped, tag = 'internal scratch']
  %s0 = inlined_call_operand.hbm [shape: f32[2,4,16,16], index: 0, kind: input, shape index: {}]
  %s1 = inlined_call_operand.hbm [shape: f32[4,16,48], index: 1, kind: input, shape index: {}]
  %s2 = inlined_call_operand.hbm [shape: f32[4,16,16], index: 2, kind: input, shape index: {}]
  %s3 = inlined_call_operand.hbm [shape: f32[4,16,16], index: 3, kind: input, shape index: {}]
  %s4 = inlined_call_operand.hbm [shape: f32[2,4,16,16], index: 4, kind: output, shape index: {}]
  %s5 = sld [smem:[#allocation0]]
  $region65: #{tpu_custom_call.1} parent=0
    _
  %s7 = ssub.s32 1, %s5
  %s8 = scalar_select 0, %s7, %s5
  $region1: #{tpu_custom_call.1} parent=0
    #allocation2 [shape = 'u8[32768]{0}', space=vmem, size = 0x8000, scoped, tag = 'input window, operand 0']
    #allocation3 [shape = 's32[2]{0}', space=sflag, size = 0x8, scoped, tag = 'scoped memory for tpu_custom_call.1']
    #allocation4 [shape = 's32[2]{0}', space=sflag, size = 0x8, scoped, tag = 'scoped memory for tpu_custom_call.1']
    #allocation5 [shape = 'u8[32768]{0}', space=vmem, size = 0x8000, scoped, tag = 'input window, operand 1']
    #allocation6 [shape = 's32[2]{0}', space=sflag, size = 0x8, scoped, tag = 'scoped memory for tpu_custom_call.1']
    #allocation7 [shape = 'u8[32768]{0}', space=vmem, size = 0x8000, scoped, tag = 'input window, operand 2']
    #allocation8 [shape = 'u8[32768]{0}', space=vmem, size = 0x8000, scoped, tag = 'input window, operand 3']
    #allocation9 [shape = 's32[2]{0}', space=sflag, size = 0x8, scoped, tag = 'scoped memory for tpu_custom_call.1']
    #allocation10 [shape = 'u8[32768]{0}', space=vmem, size = 0x8000, scoped, tag = 'output window, operand 0']
    %9 = vsyncpa [#allocation3], 0
    %s10 = scalar_lea.sflag [#allocation3], 1
    %11 = vsyncpa %s10, 0
    %12 = vsyncpa [#allocation6], 0
    %s13 = scalar_lea.sflag [#allocation6], 1
    %14 = vsyncpa %s13, 0
    %15 = vsyncpa [#allocation9], 0
    %s16 = scalar_lea.sflag [#allocation9], 1
    %17 = vsyncpa %s16, 0
    %18 = vsyncpa [#allocation4], 0
    %s19 = scalar_lea.sflag [#allocation4], 1
    %20 = vsyncpa %s19, 0
    loop: start=0, step=1, limit=6
    $region2: #{tpu_custom_call.1} parent=1 // loop_pre_header
      _
    $region3: #{tpu_custom_call.1} parent=1 // loop_header
      %s22 = sphi 0, %s26
      %p23 = scmp.ge.s32.totalorder %s22, 6
      %s29 = sphi 0, %s41
      %s30 = sphi 0, %s37
      %s31 = sphi 0, %s29
      %s32 = sphi 0, %s30
      %s33 = sphi 0, %s31
      %s34 = sphi 0, %s32
      %s46 = sphi 0, %s48
      %s49 = sphi 0, %s46
      %s50 = sphi 0, %s49
      %s66 = sphi 0, %s50
      %s72 = sphi 0, %s74
      %s75 = sphi 0, %s72
      %s76 = sphi 0, %s75
      %s92 = sphi 0, %s76
      %s98 = sphi 0, %s100
      %s101 = sphi 0, %s98
      %s102 = sphi 0, %s101
      %s118 = sphi 0, %s102
      %s124 = sphi 0, %s126
      %s127 = sphi 0, %s124
      %s128 = sphi 0, %s127
      %s144 = sphi 0, %s128
      %s152 = sphi 0, %s154
      %s155 = sphi 0, %s152
      %s156 = sphi 0, %s155
      %s172 = sphi 0, %s156
    $region4: #{tpu_custom_call.1} parent=1 // loop_header_branch
      %25 = sbr.rel (%p23) target = $region8
    $region5: #{tpu_custom_call.1} parent=1 // loop_body
      %s27 = ssub.s32 %s22, 1
      %s28 = ssub.s32 %s22, 2
      %s35 = sadd.s32 1, %s30
      %p36 = scmp.ge.s32.totalorder %s35, 2
      %s37 = scalar_select %p36, 0, %s35
      %s38 = sadd.s32 1, %s29
      %s39 = scalar_select %p36, %s38, %s29
      %p40 = scmp.ge.s32.totalorder %s39, 2
      %s41 = scalar_select %p40, 0, %s39
      %s42 = ssub.s32 %s30, %s37
      %s43 = ssub.s32 %s29, %s41
      %s44 = sor.u32 %s42, %s43
      %p45 = scmp.eq.s32.totalorder %s44, 0
      %s47 = sadd.s32 %s46, 1
      %s48 = scalar_select %p45, %s46, %s47
      %p51 = pneg %p45
      %p52 = scmp.eq.s32.totalorder %s22, 3
      %p53 = por %p51, %p52
      %p54 = scmp.ne.s32.totalorder %s46, %s49
      %p55 = scmp.eq.s32.totalorder %s22, 0
      %p56 = por %p54, %p55
      %p57 = scmp.ne.s32.totalorder %s46, %s49
      %p58 = scmp.eq.s32.totalorder %s27, 3
      %p59 = por %p57, %p58
      %p60 = scmp.ne.s32.totalorder %s49, %s50
      %p61 = scmp.eq.s32.totalorder %s27, 0
      %p62 = por %p60, %p61
      %p63 = scmp.ne.s32.totalorder %s49, %s50
      %p64 = scmp.eq.s32.totalorder %s28, 3
      %p65 = por %p63, %p64
      %p67 = scmp.ne.s32.totalorder %s50, %s66
      %p68 = scmp.eq.s32.totalorder %s28, 0
      %p69 = por %p67, %p68
      %s70 = ssub.s32 %s29, %s41
      %p71 = scmp.eq.s32.totalorder %s70, 0
      %s73 = sadd.s32 %s72, 1
      %s74 = scalar_select %p71, %s72, %s73
      %p77 = pneg %p71
      %p78 = scmp.eq.s32.totalorder %s22, 3
      %p79 = por %p77, %p78
      %p80 = scmp.ne.s32.totalorder %s72, %s75
      %p81 = scmp.eq.s32.totalorder %s22, 0
      %p82 = por %p80, %p81
      %p83 = scmp.ne.s32.totalorder %s72, %s75
      %p84 = scmp.eq.s32.totalorder %s27, 3
      %p85 = por %p83, %p84
      %p86 = scmp.ne.s32.totalorder %s75, %s76
      %p87 = scmp.eq.s32.totalorder %s27, 0
      %p88 = por %p86, %p87
      %p89 = scmp.ne.s32.totalorder %s75, %s76
      %p90 = scmp.eq.s32.totalorder %s28, 3
      %p91 = por %p89, %p90
      %p93 = scmp.ne.s32.totalorder %s76, %s92
      %p94 = scmp.eq.s32.totalorder %s28, 0
      %p95 = por %p93, %p94
      %s96 = ssub.s32 %s29, %s41
      %p97 = scmp.eq.s32.totalorder %s96, 0
      %s99 = sadd.s32 %s98, 1
      %s100 = scalar_select %p97, %s98, %s99
      %p103 = pneg %p97
      %p104 = scmp.eq.s32.totalorder %s22, 3
      %p105 = por %p103, %p104
      %p106 = scmp.ne.s32.totalorder %s98, %s101
      %p107 = scmp.eq.s32.totalorder %s22, 0
      %p108 = por %p106, %p107
      %p109 = scmp.ne.s32.totalorder %s98, %s101
      %p110 = scmp.eq.s32.totalorder %s27, 3
      %p111 = por %p109, %p110
      %p112 = scmp.ne.s32.totalorder %s101, %s102
      %p113 = scmp.eq.s32.totalorder %s27, 0
      %p114 = por %p112, %p113
      %p115 = scmp.ne.s32.totalorder %s101, %s102
      %p116 = scmp.eq.s32.totalorder %s28, 3
      %p117 = por %p115, %p116
      %p119 = scmp.ne.s32.totalorder %s102, %s118
      %p120 = scmp.eq.s32.totalorder %s28, 0
      %p121 = por %p119, %p120
      %s122 = ssub.s32 %s29, %s41
      %p123 = scmp.eq.s32.totalorder %s122, 0
      %s125 = sadd.s32 %s124, 1
      %s126 = scalar_select %p123, %s124, %s125
      %p129 = pneg %p123
      %p130 = scmp.eq.s32.totalorder %s22, 3
      %p131 = por %p129, %p130
      %p132 = scmp.ne.s32.totalorder %s124, %s127
      %p133 = scmp.eq.s32.totalorder %s22, 0
      %p134 = por %p132, %p133
      %p135 = scmp.ne.s32.totalorder %s124, %s127
      %p136 = scmp.eq.s32.totalorder %s27, 3
      %p137 = por %p135, %p136
      %p138 = scmp.ne.s32.totalorder %s127, %s128
      %p139 = scmp.eq.s32.totalorder %s27, 0
      %p140 = por %p138, %p139
      %p141 = scmp.ne.s32.totalorder %s127, %s128
      %p142 = scmp.eq.s32.totalorder %s28, 3
      %p143 = por %p141, %p142
      %p145 = scmp.ne.s32.totalorder %s128, %s144
      %p146 = scmp.eq.s32.totalorder %s28, 0
      %p147 = por %p145, %p146
      %s148 = ssub.s32 %s30, %s37
      %s149 = ssub.s32 %s29, %s41
      %s150 = sor.u32 %s148, %s149
      %p151 = scmp.eq.s32.totalorder %s150, 0
      %s153 = sadd.s32 %s152, 1
      %s154 = scalar_select %p151, %s152, %s153
      %p157 = pneg %p151
      %p158 = scmp.eq.s32.totalorder %s22, 3
      %p159 = por %p157, %p158
      %p160 = scmp.ne.s32.totalorder %s152, %s155
      %p161 = scmp.eq.s32.totalorder %s22, 0
      %p162 = por %p160, %p161
      %p163 = scmp.ne.s32.totalorder %s152, %s155
      %p164 = scmp.eq.s32.totalorder %s27, 3
      %p165 = por %p163, %p164
      %p166 = scmp.ne.s32.totalorder %s155, %s156
      %p167 = scmp.eq.s32.totalorder %s27, 0
      %p168 = por %p166, %p167
      %p169 = scmp.ne.s32.totalorder %s155, %s156
      %p170 = scmp.eq.s32.totalorder %s28, 3
      %p171 = por %p169, %p170
      %p173 = scmp.ne.s32.totalorder %s156, %s172
      %p174 = scmp.eq.s32.totalorder %s28, 0
      %p175 = por %p173, %p174
      %p176 = scmp.le.s32.totalorder 1, %s22
      %p177 = scmp.lt.s32.totalorder %s22, 5
      %p178 = pnand %p176, %p177
      %p179 = pneg %p178
      // Predicated region
      $region9: #{tpu_custom_call.1} parent=5 // pred_check
        _
      $region10: #{tpu_custom_call.1} parent=5 // pred_check_branch
        %181 = sbr.rel (%p178) target = $region12
      $region11: #{tpu_custom_call.1} parent=5 // pred_region
        %s182 = ssub.s32 %s22, 1
      $region12: #{tpu_custom_call.1} parent=5 // pred_fallthru
        _
      %p183 = scmp.lt.s32.totalorder %s22, 4
      // Predicated region
      $region13: #{tpu_custom_call.1} parent=5 // pred_check
        %p184 = pneg %p183
      $region14: #{tpu_custom_call.1} parent=5 // pred_check_branch
        %186 = sbr.rel (%p184) target = $region16
      $region15: #{tpu_custom_call.1} parent=5 // pred_region
        // Predicated region
        $region17: #{tpu_custom_call.1} parent=15 // pred_check
          %p187 = pneg %p56
        $region18: #{tpu_custom_call.1} parent=15 // pred_check_branch
          %189 = sbr.rel (%p187) target = $region20
        $region19: #{tpu_custom_call.1} parent=15 // pred_region
          %s190 = sand.u32 %s46, 1
          %s191 = scalar_lea.sflag [#allocation3], %s190
          %s192 = sand.u32 %s46, 1
          %s193 = smul.addr %s192, 32
          %s194 = scalar_lea.vmem [#allocation2], %s193
          %s195 = smul.u32 2, %s29
          %s197 = ssub.s32 512, 512
          %198 = vsyncadd %s191, %s197
          %s199 = smul.addr %s195, 2
          %s200 = smul.addr %s30, 8
          %s201 = sadd.s32 %s199, %s200
          %s202 = smul.addr %s201, 128
          %s203 = scalar_lea.hbm %s0, %s202
          %s204 = sshll.u32 %s194, 4
          %s205 = int_to_ptr.vmem [resolvable:$true] %s204
          %210 = dma.hbm_to_vmem [thread:$0]  %s203, 512, %s205, %s191, 128, 128, 8
        $region20: #{tpu_custom_call.1} parent=15 // pred_fallthru
          _
        // Predicated region
        $region21: #{tpu_custom_call.1} parent=15 // pred_check
          %p211 = pneg %p82
        $region22: #{tpu_custom_call.1} parent=15 // pred_check_branch
          %213 = sbr.rel (%p211) target = $region24
        $region23: #{tpu_custom_call.1} parent=15 // pred_region
          %s214 = sand.u32 %s22, 1
          %s215 = scalar_lea.sflag [#allocation6], %s214
          %s216 = sand.u32 %s72, 1
          %s217 = smul.addr %s216, 32
          %s218 = scalar_lea.vmem [#allocation5], %s217
          %s219 = smul.u32 2, %s29
          %s221 = ssub.s32 512, 512
          %222 = vsyncadd %s215, %s221
          %s223 = smul.addr %s219, 2
          %s224 = smul.addr %s223, 128
          %s225 = scalar_lea.hbm %s1, %s224
          %s226 = sshll.u32 %s218, 4
          %s227 = int_to_ptr.vmem [resolvable:$true] %s226
          %232 = dma.hbm_to_vmem [thread:$0]  %s225, 512, %s227, %s215, 128, 128, 8
        $region24: #{tpu_custom_call.1} parent=15 // pred_fallthru
          _
        // Predicated region
        $region25: #{tpu_custom_call.1} parent=15 // pred_check
          %p233 = pneg %p108
        $region26: #{tpu_custom_call.1} parent=15 // pred_check_branch
          %235 = sbr.rel (%p233) target = $region28
        $region27: #{tpu_custom_call.1} parent=15 // pred_region
          %s236 = sand.u32 %s22, 1
          %s237 = scalar_lea.sflag [#allocation6], %s236
          %s238 = sand.u32 %s98, 1
          %s239 = smul.addr %s238, 32
          %s240 = scalar_lea.vmem [#allocation7], %s239
          %s241 = smul.u32 2, %s29
          %s243 = ssub.s32 512, 512
          %244 = vsyncadd %s237, %s243
          %s245 = smul.addr %s241, 2
          %s246 = smul.addr %s245, 128
          %s247 = scalar_lea.hbm %s2, %s246
          %s248 = sshll.u32 %s240, 4
          %s249 = int_to_ptr.vmem [resolvable:$true] %s248
          %254 = dma.hbm_to_vmem [thread:$0]  %s247, 512, %s249, %s237, 128, 128, 8
        $region28: #{tpu_custom_call.1} parent=15 // pred_fallthru
          _
        // Predicated region
        $region29: #{tpu_custom_call.1} parent=15 // pred_check
          %p255 = pneg %p134
        $region30: #{tpu_custom_call.1} parent=15 // pred_check_branch
          %257 = sbr.rel (%p255) target = $region32
        $region31: #{tpu_custom_call.1} parent=15 // pred_region
          %s258 = sand.u32 %s124, 1
          %s259 = scalar_lea.sflag [#allocation9], %s258
          %s260 = sand.u32 %s124, 1
          %s261 = smul.addr %s260, 32
          %s262 = scalar_lea.vmem [#allocation8], %s261
          %s263 = smul.u32 2, %s29
          %s265 = ssub.s32 512, 512
          %266 = vsyncadd %s259, %s265
          %s267 = smul.addr %s263, 2
          %s268 = smul.addr %s267, 128
          %s269 = scalar_lea.hbm %s3, %s268
          %s270 = sshll.u32 %s262, 4
          %s271 = int_to_ptr.vmem [resolvable:$true] %s270
          %276 = dma.hbm_to_vmem [thread:$0]  %s269, 512, %s271, %s259, 128, 128, 8
        $region32: #{tpu_custom_call.1} parent=15 // pred_fallthru
          _
      $region16: #{tpu_custom_call.1} parent=5 // pred_fallthru
        _
      %p277 = scmp.le.s32.totalorder 1, %s22
      %p278 = scmp.lt.s32.totalorder %s22, 5
      %p279 = pnand %p277, %p278
      %p280 = pneg %p279
      // Predicated region
      $region33: #{tpu_custom_call.1} parent=5 // pred_check
        _
      $region34: #{tpu_custom_call.1} parent=5 // pred_check_branch
        %282 = sbr.rel (%p279) target = $region36
      $region35: #{tpu_custom_call.1} parent=5 // pred_region
        %s283 = ssub.s32 %s22, 1
        %s284 = sand.u32 %s49, 1
        %s285 = scalar_lea.sflag [#allocation3], %s284
        %s286 = sand.u32 %s49, 1
        %s287 = smul.addr %s286, 32
        %s288 = scalar_lea.vmem [#allocation2], %s287
        // Predicated region
        $region37: #{tpu_custom_call.1} parent=35 // pred_check
          %p289 = pneg %p62
        $region38: #{tpu_custom_call.1} parent=35 // pred_check_branch
          %291 = sbr.rel (%p289) target = $region40
        $region39: #{tpu_custom_call.1} parent=35 // pred_region
          %292 = dma.done %s285, 512
        $region40: #{tpu_custom_call.1} parent=35 // pred_fallthru
          _
        %s293 = sand.u32 %s27, 1
        %s294 = scalar_lea.sflag [#allocation6], %s293
        %s295 = sand.u32 %s75, 1
        %s296 = smul.addr %s295, 32
        %s297 = scalar_lea.vmem [#allocation5], %s296
        // Predicated region
        $region41: #{tpu_custom_call.1} parent=35 // pred_check
          %p298 = pneg %p88
        $region42: #{tpu_custom_call.1} parent=35 // pred_check_branch
          %300 = sbr.rel (%p298) target = $region44
        $region43: #{tpu_custom_call.1} parent=35 // pred_region
          %301 = dma.done %s294, 512
        $region44: #{tpu_custom_call.1} parent=35 // pred_fallthru
          _
        %s302 = sand.u32 %s27, 1
        %s303 = scalar_lea.sflag [#allocation6], %s302
        %s304 = sand.u32 %s101, 1
        %s305 = smul.addr %s304, 32
        %s306 = scalar_lea.vmem [#allocation7], %s305
        // Predicated region
        $region45: #{tpu_custom_call.1} parent=35 // pred_check
          %p307 = pneg %p114
        $region46: #{tpu_custom_call.1} parent=35 // pred_check_branch
          %309 = sbr.rel (%p307) target = $region48
        $region47: #{tpu_custom_call.1} parent=35 // pred_region
          %310 = dma.done %s303, 512
        $region48: #{tpu_custom_call.1} parent=35 // pred_fallthru
          _
        %s311 = sand.u32 %s127, 1
        %s312 = scalar_lea.sflag [#allocation9], %s311
        %s313 = sand.u32 %s127, 1
        %s314 = smul.addr %s313, 32
        %s315 = scalar_lea.vmem [#allocation8], %s314
        // Predicated region
        $region49: #{tpu_custom_call.1} parent=35 // pred_check
          %p316 = pneg %p140
        $region50: #{tpu_custom_call.1} parent=35 // pred_check_branch
          %318 = sbr.rel (%p316) target = $region52
        $region51: #{tpu_custom_call.1} parent=35 // pred_region
          %319 = dma.done %s312, 512
        $region52: #{tpu_custom_call.1} parent=35 // pred_fallthru
          _
        %s320 = sand.u32 %s49, 1
        %s321 = scalar_lea.sflag [#allocation3], %s320
        %s322 = sand.u32 %s49, 1
        %s323 = smul.addr %s322, 32
        %s324 = scalar_lea.vmem [#allocation2], %s323
        %p325 = pneg %p62
        %p326 = pneg %p59
        %s327 = sand.u32 %s27, 1
        %s328 = scalar_lea.sflag [#allocation6], %s327
        %s329 = sand.u32 %s75, 1
        %s330 = smul.addr %s329, 32
        %s331 = scalar_lea.vmem [#allocation5], %s330
        %p332 = pneg %p88
        %p333 = pneg %p85
        %s334 = sand.u32 %s27, 1
        %s335 = scalar_lea.sflag [#allocation6], %s334
        %s336 = sand.u32 %s101, 1
        %s337 = smul.addr %s336, 32
        %s338 = scalar_lea.vmem [#allocation7], %s337
        %p339 = pneg %p114
        %p340 = pneg %p111
        %s341 = sand.u32 %s127, 1
        %s342 = scalar_lea.sflag [#allocation9], %s341
        %s343 = sand.u32 %s127, 1
        %s344 = smul.addr %s343, 32
        %s345 = scalar_lea.vmem [#allocation8], %s344
        %p346 = pneg %p140
        %p347 = pneg %p137
        %p348 = pneg %p168
        %p349 = pneg %p165
        %s350 = sand.u32 %s155, 1
        %s351 = scalar_lea.sflag [#allocation4], %s350
        %s352 = sand.u32 %s155, 1
        %s353 = smul.addr %s352, 32
        %s354 = scalar_lea.vmem [#allocation10], %s353
        %s355 = smul.u32 2, %s31
        %s356 = smul.u32 2, %s31
        %s357 = smul.u32 2, %s31
        %s358 = smul.u32 2, %s31
        %s359 = smul.u32 2, %s31
        %v360 = vld [vmem:[%s288] sm:$0xff]
        %v361 = vld [vmem:[%s288 + $0x8] sm:$0xff]
        %v362 = vld [vmem:[%s288 + $0x10] sm:$0xff]
        %v363 = vld [vmem:[%s288 + $0x18] sm:$0xff]
        %368 = vrot.lane.b32.xlu0 %v360, 1
        %v369 = vpop.permute.xlu0 %368
        %370 = vrot.lane.b32.xlu0 %v361, 1
        %v371 = vpop.permute.xlu0 %370
        %372 = vrot.lane.b32.xlu0 %v362, 1
        %v373 = vpop.permute.xlu0 %372
        %374 = vrot.lane.b32.xlu0 %v363, 1
        %v375 = vpop.permute.xlu0 %374
        %vm380 = vcmask 7168
        %v381 = vsel %vm380, 0.0, %v369
        %v382 = vsel %vm380, 0.0, %v371
        %v383 = vsel %vm380, 0.0, %v373
        %v384 = vsel %vm380, 0.0, %v375
        %385 = vrot.lane.b32.xlu0 %v360, 127
        %v386 = vpop.permute.xlu0 %385
        %387 = vrot.lane.b32.xlu0 %v361, 127
        %v388 = vpop.permute.xlu0 %387
        %389 = vrot.lane.b32.xlu0 %v362, 127
        %v390 = vpop.permute.xlu0 %389
        %391 = vrot.lane.b32.xlu0 %v363, 127
        %v392 = vpop.permute.xlu0 %391
        %vm397 = vcmask 121856
        %v398 = vsel %vm397, %v386, 0.0
        %v399 = vsel %vm397, %v388, 0.0
        %v400 = vsel %vm397, %v390, 0.0
        %v401 = vsel %vm397, %v392, 0.0
        %v402 = vld [vmem:[%s297] sm:$0xff]
        %v403 = vld [vmem:[%s297 + $0x8] sm:$0xff]
        %v404 = vld [vmem:[%s297 + $0x10] sm:$0xff]
        %v405 = vld [vmem:[%s297 + $0x18] sm:$0xff]
        %vm406 = vcmask 392192
        %v408 = vsel %vm406, %v402, 0
        %v411 = vsel %vm406, %v403, 0
        %413 = vmatprep.subr.mxu0 0.0
        %414 = vmatpush1.msra.mxu0 %v381
        %415 = vmatprep.subr.mxu0 0.0
        %416 = vmatpush1.msra.mxu0 %v382
        %417 = vmatprep.subr.mxu0 0.0
        %418 = vmatpush1.msra.mxu0 %v360
        %419 = vmatprep.subr.mxu0 0.0
        %420 = vmatpush1.msra.mxu0 %v361
        %421 = vmatprep.subr.mxu0 0.0
        %422 = vmatpush1.msra.mxu0 %v398
        %423 = vmatprep.subr.mxu0 0.0
        %424 = vmatpush1.msra.mxu0 %v399
        %425 = vmatprep.subr.mxu0 0.0
        %426 = vmatpush1.msra.mxu0 0.0
        %427 = vmatprep.subr.mxu0 0.0
        %428 = vmatpush1.msra.mxu0 0.0
        %429 = vmatprep.subr.mxu0 0.0
        %430 = vmatpush1.msra.mxu0 0.0
        %431 = vmatprep.subr.mxu0 0.0
        %432 = vmatpush1.msra.mxu0 0.0
        %433 = vmatprep.subr.mxu0 0.0
        %434 = vmatpush1.msra.mxu0 0.0
        %435 = vmatprep.subr.mxu0 0.0
        %436 = vmatpush1.msra.mxu0 0.0
        %437 = vmatprep.subr.mxu0 0.0
        %438 = vmatpush1.msra.mxu0 0.0
        %439 = vmatprep.subr.mxu0 0.0
        %440 = vmatpush1.msra.mxu0 0.0
        %441 = vmatprep.subr.mxu0 0.0
        %442 = vmatpush1.msra.mxu0 0.0
        %443 = vmatprep.subr.mxu0 0.0
        %444 = vmatpush1.msra.mxu0 0.0
        %445 = vmatprep.subr.mxu0 0.0
        %446 = vmatpush1.msra.mxu0 0.0
        %447 = vmatprep.subr.mxu0 0.0
        %448 = vmatpush1.msra.mxu0 0.0
        %449 = vmatprep.subr.mxu0 0.0
        %450 = vmatpush1.msra.mxu0 0.0
        %451 = vmatprep.subr.mxu0 0.0
        %452 = vmatpush1.msra.mxu0 0.0
        %453 = vmatprep.subr.mxu0 0.0
        %454 = vmatpush1.msra.mxu0 0.0
        %455 = vmatprep.subr.mxu0 0.0
        %456 = vmatpush1.msra.mxu0 0.0
        %457 = vmatprep.subr.mxu0 0.0
        %458 = vmatpush1.msra.mxu0 0.0
        %459 = vmatprep.subr.mxu0 0.0
        %460 = vmatpush1.msra.mxu0 0.0
        %461 = vmatprep.subr.mxu0 0.0
        %462 = vmatpush1.msra.mxu0 0.0
        %463 = vmatprep.subr.mxu0 0.0
        %464 = vmatpush1.msra.mxu0 0.0
        %465 = vmatprep.subr.mxu0 0.0
        %466 = vmatpush1.msra.mxu0 0.0
        %467 = vmatprep.subr.mxu0 0.0
        %468 = vmatpush1.msra.mxu0 0.0
        %469 = vmatprep.subr.mxu0 0.0
        %470 = vmatpush1.msra.mxu0 0.0
        %471 = vmatprep.subr.mxu0 0.0
        %472 = vmatpush1.msra.mxu0 0.0
        %473 = vmatprep.subr.mxu0 0.0
        %474 = vmatpush1.msra.mxu0 0.0
        %475 = vmatprep.subr.mxu0 0.0
        %476 = vmatpush1.msra.mxu0 0.0
        %477 = vmatprep.mubr.f32.mxu0 0.0
        %478 = vmatmul.mubr.f32.gmra.mrb[0].mxu0 %v408
        %v479 = vpop.f32.mrb[0].mxu0
        %v480 = vadd.f32 0.0, %v479
        %v481 = vpop.f32.mrb[0].mxu0
        %482 = vmatprep.mubr.f32.mxu0 0.0
        %483 = vmatmul.mubr.f32.gmra.mrb[0].mxu0 %v411
        %v484 = vpop.f32.mrb[0].mxu0
        %v485 = vadd.f32 0.0, %v484
        %v486 = vpop.f32.mrb[0].mxu0
        %487 = vdwg.mxu0
        %v489 = vsel %vm406, %v404, 0
        %v492 = vsel %vm406, %v405, 0
        %494 = vmatprep.subr.mxu0 0.0
        %495 = vmatpush1.msra.mxu0 %v383
        %496 = vmatprep.subr.mxu0 0.0
        %497 = vmatpush1.msra.mxu0 %v384
        %498 = vmatprep.subr.mxu0 0.0
        %499 = vmatpush1.msra.mxu0 %v362
        %500 = vmatprep.subr.mxu0 0.0
        %501 = vmatpush1.msra.mxu0 %v363
        %502 = vmatprep.subr.mxu0 0.0
        %503 = vmatpush1.msra.mxu0 %v400
        %504 = vmatprep.subr.mxu0 0.0
        %505 = vmatpush1.msra.mxu0 %v401
        %506 = vmatprep.subr.mxu0 0.0
        %507 = vmatpush1.msra.mxu0 0.0
        %508 = vmatprep.subr.mxu0 0.0
        %509 = vmatpush1.msra.mxu0 0.0
        %510 = vmatprep.subr.mxu0 0.0
        %511 = vmatpush1.msra.mxu0 0.0
        %512 = vmatprep.subr.mxu0 0.0
        %513 = vmatpush1.msra.mxu0 0.0
        %514 = vmatprep.subr.mxu0 0.0
        %515 = vmatpush1.msra.mxu0 0.0
        %516 = vmatprep.subr.mxu0 0.0
        %517 = vmatpush1.msra.mxu0 0.0
        %518 = vmatprep.subr.mxu0 0.0
        %519 = vmatpush1.msra.mxu0 0.0
        %520 = vmatprep.subr.mxu0 0.0
        %521 = vmatpush1.msra.mxu0 0.0
        %522 = vmatprep.subr.mxu0 0.0
        %523 = vmatpush1.msra.mxu0 0.0
        %524 = vmatprep.subr.mxu0 0.0
        %525 = vmatpush1.msra.mxu0 0.0
        %526 = vmatprep.subr.mxu0 0.0
        %527 = vmatpush1.msra.mxu0 0.0
        %528 = vmatprep.subr.mxu0 0.0
        %529 = vmatpush1.msra.mxu0 0.0
        %530 = vmatprep.subr.mxu0 0.0
        %531 = vmatpush1.msra.mxu0 0.0
        %532 = vmatprep.subr.mxu0 0.0
        %533 = vmatpush1.msra.mxu0 0.0
        %534 = vmatprep.subr.mxu0 0.0
        %535 = vmatpush1.msra.mxu0 0.0
        %536 = vmatprep.subr.mxu0 0.0
        %537 = vmatpush1.msra.mxu0 0.0
        %538 = vmatprep.subr.mxu0 0.0
        %539 = vmatpush1.msra.mxu0 0.0
        %540 = vmatprep.subr.mxu0 0.0
        %541 = vmatpush1.msra.mxu0 0.0
        %542 = vmatprep.subr.mxu0 0.0
        %543 = vmatpush1.msra.mxu0 0.0
        %544 = vmatprep.subr.mxu0 0.0
        %545 = vmatpush1.msra.mxu0 0.0
        %546 = vmatprep.subr.mxu0 0.0
        %547 = vmatpush1.msra.mxu0 0.0
        %548 = vmatprep.subr.mxu0 0.0
        %549 = vmatpush1.msra.mxu0 0.0
        %550 = vmatprep.subr.mxu0 0.0
        %551 = vmatpush1.msra.mxu0 0.0
        %552 = vmatprep.subr.mxu0 0.0
        %553 = vmatpush1.msra.mxu0 0.0
        %554 = vmatprep.subr.mxu0 0.0
        %555 = vmatpush1.msra.mxu0 0.0
        %556 = vmatprep.subr.mxu0 0.0
        %557 = vmatpush1.msra.mxu0 0.0
        %558 = vmatprep.mubr.f32.mxu0 0.0
        %559 = vmatmul.mubr.f32.gmra.mrb[0].mxu0 %v489
        %v560 = vpop.f32.mrb[0].mxu0
        %v561 = vadd.f32 0.0, %v560
        %v562 = vpop.f32.mrb[0].mxu0
        %563 = vmatprep.mubr.f32.mxu0 0.0
        %564 = vmatmul.mubr.f32.gmra.mrb[0].mxu0 %v492
        %v565 = vpop.f32.mrb[0].mxu0
        %v566 = vadd.f32 0.0, %v565
        %v567 = vpop.f32.mrb[0].mxu0
        %568 = vdwg.mxu0
        %v569 = vld [vmem:[%s306] sm:$0xff]
        %v570 = vld [vmem:[%s306 + $0x8] sm:$0xff]
        %v571 = vld [vmem:[%s306 + $0x10] sm:$0xff]
        %v572 = vld [vmem:[%s306 + $0x18] sm:$0xff]
        %vm573 = vcmask 130048
        %v575 = vsel %vm573, %v480, 0
        %v578 = vsel %vm573, %v485, 0
        %580 = vmatprep.subr.mxu0 0.0
        %581 = vmatpush1.msra.mxu0 %v569
        %582 = vmatprep.subr.mxu0 0.0
        %583 = vmatpush1.msra.mxu0 %v570
        %584 = vmatprep.subr.mxu0 0.0
        %585 = vmatpush1.msra.mxu0 0.0
        %586 = vmatprep.subr.mxu0 0.0
        %587 = vmatpush1.msra.mxu0 0.0
        %588 = vmatprep.subr.mxu0 0.0
        %589 = vmatpush1.msra.mxu0 0.0
        %590 = vmatprep.subr.mxu0 0.0
        %591 = vmatpush1.msra.mxu0 0.0
        %592 = vmatprep.subr.mxu0 0.0
        %593 = vmatpush1.msra.mxu0 0.0
        %594 = vmatprep.subr.mxu0 0.0
        %595 = vmatpush1.msra.mxu0 0.0
        %596 = vmatprep.subr.mxu0 0.0
        %597 = vmatpush1.msra.mxu0 0.0
        %598 = vmatprep.subr.mxu0 0.0
        %599 = vmatpush1.msra.mxu0 0.0
        %600 = vmatprep.subr.mxu0 0.0
        %601 = vmatpush1.msra.mxu0 0.0
        %602 = vmatprep.subr.mxu0 0.0
        %603 = vmatpush1.msra.mxu0 0.0
        %604 = vmatprep.subr.mxu0 0.0
        %605 = vmatpush1.msra.mxu0 0.0
        %606 = vmatprep.subr.mxu0 0.0
        %607 = vmatpush1.msra.mxu0 0.0
        %608 = vmatprep.subr.mxu0 0.0
        %609 = vmatpush1.msra.mxu0 0.0
        %610 = vmatprep.subr.mxu0 0.0
        %611 = vmatpush1.msra.mxu0 0.0
        %612 = vmatprep.subr.mxu0 0.0
        %613 = vmatpush1.msra.mxu0 0.0
        %614 = vmatprep.subr.mxu0 0.0
        %615 = vmatpush1.msra.mxu0 0.0
        %616 = vmatprep.subr.mxu0 0.0
        %617 = vmatpush1.msra.mxu0 0.0
        %618 = vmatprep.subr.mxu0 0.0
        %619 = vmatpush1.msra.mxu0 0.0
        %620 = vmatprep.subr.mxu0 0.0
        %621 = vmatpush1.msra.mxu0 0.0
        %622 = vmatprep.subr.mxu0 0.0
        %623 = vmatpush1.msra.mxu0 0.0
        %624 = vmatprep.subr.mxu0 0.0
        %625 = vmatpush1.msra.mxu0 0.0
        %626 = vmatprep.subr.mxu0 0.0
        %627 = vmatpush1.msra.mxu0 0.0
        %628 = vmatprep.subr.mxu0 0.0
        %629 = vmatpush1.msra.mxu0 0.0
        %630 = vmatprep.subr.mxu0 0.0
        %631 = vmatpush1.msra.mxu0 0.0
        %632 = vmatprep.subr.mxu0 0.0
        %633 = vmatpush1.msra.mxu0 0.0
        %634 = vmatprep.subr.mxu0 0.0
        %635 = vmatpush1.msra.mxu0 0.0
        %636 = vmatprep.subr.mxu0 0.0
        %637 = vmatpush1.msra.mxu0 0.0
        %638 = vmatprep.subr.mxu0 0.0
        %639 = vmatpush1.msra.mxu0 0.0
        %640 = vmatprep.subr.mxu0 0.0
        %641 = vmatpush1.msra.mxu0 0.0
        %642 = vmatprep.subr.mxu0 0.0
        %643 = vmatpush1.msra.mxu0 0.0
        %644 = vmatprep.mubr.f32.mxu0 0.0
        %645 = vmatmul.mubr.f32.gmra.mrb[0].mxu0 %v575
        %v646 = vpop.f32.mrb[0].mxu0
        %v647 = vadd.f32 0.0, %v646
        %v648 = vpop.f32.mrb[0].mxu0
        %649 = vmatprep.mubr.f32.mxu0 0.0
        %650 = vmatmul.mubr.f32.gmra.mrb[0].mxu0 %v578
        %v651 = vpop.f32.mrb[0].mxu0
        %v652 = vadd.f32 0.0, %v651
        %v653 = vpop.f32.mrb[0].mxu0
        %654 = vdwg.mxu0
        %v656 = vsel %vm573, %v561, 0
        %v659 = vsel %vm573, %v566, 0
        %661 = vmatprep.subr.mxu0 0.0
        %662 = vmatpush1.msra.mxu0 %v571
        %663 = vmatprep.subr.mxu0 0.0
        %664 = vmatpush1.msra.mxu0 %v572
        %665 = vmatprep.subr.mxu0 0.0
        %666 = vmatpush1.msra.mxu0 0.0
        %667 = vmatprep.subr.mxu0 0.0
        %668 = vmatpush1.msra.mxu0 0.0
        %669 = vmatprep.subr.mxu0 0.0
        %670 = vmatpush1.msra.mxu0 0.0
        %671 = vmatprep.subr.mxu0 0.0
        %672 = vmatpush1.msra.mxu0 0.0
        %673 = vmatprep.subr.mxu0 0.0
        %674 = vmatpush1.msra.mxu0 0.0
        %675 = vmatprep.subr.mxu0 0.0
        %676 = vmatpush1.msra.mxu0 0.0
        %677 = vmatprep.subr.mxu0 0.0
        %678 = vmatpush1.msra.mxu0 0.0
        %679 = vmatprep.subr.mxu0 0.0
        %680 = vmatpush1.msra.mxu0 0.0
        %681 = vmatprep.subr.mxu0 0.0
        %682 = vmatpush1.msra.mxu0 0.0
        %683 = vmatprep.subr.mxu0 0.0
        %684 = vmatpush1.msra.mxu0 0.0
        %685 = vmatprep.subr.mxu0 0.0
        %686 = vmatpush1.msra.mxu0 0.0
        %687 = vmatprep.subr.mxu0 0.0
        %688 = vmatpush1.msra.mxu0 0.0
        %689 = vmatprep.subr.mxu0 0.0
        %690 = vmatpush1.msra.mxu0 0.0
        %691 = vmatprep.subr.mxu0 0.0
        %692 = vmatpush1.msra.mxu0 0.0
        %693 = vmatprep.subr.mxu0 0.0
        %694 = vmatpush1.msra.mxu0 0.0
        %695 = vmatprep.subr.mxu0 0.0
        %696 = vmatpush1.msra.mxu0 0.0
        %697 = vmatprep.subr.mxu0 0.0
        %698 = vmatpush1.msra.mxu0 0.0
        %699 = vmatprep.subr.mxu0 0.0
        %700 = vmatpush1.msra.mxu0 0.0
        %701 = vmatprep.subr.mxu0 0.0
        %702 = vmatpush1.msra.mxu0 0.0
        %703 = vmatprep.subr.mxu0 0.0
        %704 = vmatpush1.msra.mxu0 0.0
        %705 = vmatprep.subr.mxu0 0.0
        %706 = vmatpush1.msra.mxu0 0.0
        %707 = vmatprep.subr.mxu0 0.0
        %708 = vmatpush1.msra.mxu0 0.0
        %709 = vmatprep.subr.mxu0 0.0
        %710 = vmatpush1.msra.mxu0 0.0
        %711 = vmatprep.subr.mxu0 0.0
        %712 = vmatpush1.msra.mxu0 0.0
        %713 = vmatprep.subr.mxu0 0.0
        %714 = vmatpush1.msra.mxu0 0.0
        %715 = vmatprep.subr.mxu0 0.0
        %716 = vmatpush1.msra.mxu0 0.0
        %717 = vmatprep.subr.mxu0 0.0
        %718 = vmatpush1.msra.mxu0 0.0
        %719 = vmatprep.subr.mxu0 0.0
        %720 = vmatpush1.msra.mxu0 0.0
        %721 = vmatprep.subr.mxu0 0.0
        %722 = vmatpush1.msra.mxu0 0.0
        %723 = vmatprep.subr.mxu0 0.0
        %724 = vmatpush1.msra.mxu0 0.0
        %725 = vmatprep.mubr.f32.mxu0 0.0
        %726 = vmatmul.mubr.f32.gmra.mrb[0].mxu0 %v656
        %v727 = vpop.f32.mrb[0].mxu0
        %v728 = vadd.f32 0.0, %v727
        %v729 = vpop.f32.mrb[0].mxu0
        %730 = vmatprep.mubr.f32.mxu0 0.0
        %731 = vmatmul.mubr.f32.gmra.mrb[0].mxu0 %v659
        %v732 = vpop.f32.mrb[0].mxu0
        %v733 = vadd.f32 0.0, %v732
        %v734 = vpop.f32.mrb[0].mxu0
        %735 = vdwg.mxu0
        %v736 = vld [vmem:[%s315] sm:$0xff]
        %v737 = vld [vmem:[%s315 + $0x8] sm:$0xff]
        %v738 = vld [vmem:[%s315 + $0x10] sm:$0xff]
        %v739 = vld [vmem:[%s315 + $0x18] sm:$0xff]
        %v740 = vadd.f32 %v736, %v647
        %v741 = vadd.f32 %v737, %v652
        %v742 = vadd.f32 %v738, %v728
        %v743 = vadd.f32 %v739, %v733
        %744 = vst.msk [vmem:[%s354] sm:$0xff] %vm573, %v740
        %745 = vst.msk [vmem:[%s354 + $0x8] sm:$0xff] %vm573, %v741
        %746 = vst.msk [vmem:[%s354 + $0x10] sm:$0xff] %vm573, %v742
        %747 = vst.msk [vmem:[%s354 + $0x18] sm:$0xff] %vm573, %v743
        %s748 = sand.u32 %s155, 1
        %s749 = scalar_lea.sflag [#allocation4], %s748
        %s750 = sand.u32 %s155, 1
        %s751 = smul.addr %s750, 32
        %s752 = scalar_lea.vmem [#allocation10], %s751
        // Predicated region
        $region53: #{tpu_custom_call.1} parent=35 // pred_check
          %p753 = pneg %p165
        $region54: #{tpu_custom_call.1} parent=35 // pred_check_branch
          %755 = sbr.rel (%p753) target = $region56
        $region55: #{tpu_custom_call.1} parent=35 // pred_region
          %s756 = smul.u32 2, %s31
          %s758 = ssub.s32 512, 512
          %759 = vsyncadd %s749, %s758
          %s760 = smul.addr %s756, 2
          %s761 = smul.addr %s32, 8
          %s762 = sadd.s32 %s760, %s761
          %s763 = smul.addr %s762, 128
          %s764 = scalar_lea.hbm %s4, %s763
          %s765 = sshll.u32 %s752, 4
          %s766 = int_to_ptr.vmem [resolvable:$true] %s765
          %771 = dma.vmem_to_hbm [thread:$0]  %s766, 512, %s764, %s749, 128, 128, 8
        $region56: #{tpu_custom_call.1} parent=35 // pred_fallthru
          _
      $region36: #{tpu_custom_call.1} parent=5 // pred_fallthru
        _
      %p772 = scmp.le.s32.totalorder 2, %s22
      // Predicated region
      $region57: #{tpu_custom_call.1} parent=5 // pred_check
        %p773 = pneg %p772
      $region58: #{tpu_custom_call.1} parent=5 // pred_check_branch
        %775 = sbr.rel (%p773) target = $region60
      $region59: #{tpu_custom_call.1} parent=5 // pred_region
        %s776 = ssub.s32 %s22, 2
        // Predicated region
        $region61: #{tpu_custom_call.1} parent=59 // pred_check
          %p777 = pneg %p171
        $region62: #{tpu_custom_call.1} parent=59 // pred_check_branch
          %779 = sbr.rel (%p777) target = $region64
        $region63: #{tpu_custom_call.1} parent=59 // pred_region
          %s780 = sand.u32 %s156, 1
          %s781 = scalar_lea.sflag [#allocation4], %s780
          %s782 = sand.u32 %s156, 1
          %s783 = smul.addr %s782, 32
          %s784 = scalar_lea.vmem [#allocation10], %s783
          %785 = dma.done %s781, 512
        $region64: #{tpu_custom_call.1} parent=59 // pred_fallthru
          _
      $region60: #{tpu_custom_call.1} parent=5 // pred_fallthru
        _
    $region6: #{tpu_custom_call.1} parent=1 // loop_footer
      %s26 = sadd.s32 1, %s22
    $region7: #{tpu_custom_call.1} parent=1 // loop_footer_branch
      %21 = sbr.rel target = $region3
    $region8: #{tpu_custom_call.1} parent=1 // loop_exit
      _
    %786 = vsyncpa [#allocation3], 1
    %s787 = scalar_lea.sflag [#allocation3], 1
    %788 = vsyncpa %s787, 1
    %789 = vsyncpa [#allocation6], 1
    %s790 = scalar_lea.sflag [#allocation6], 1
    %791 = vsyncpa %s790, 1
    %792 = vsyncpa [#allocation9], 1
    %s793 = scalar_lea.sflag [#allocation9], 1
    %794 = vsyncpa %s793, 1
    %795 = vsyncpa [#allocation4], 1
    %s796 = scalar_lea.sflag [#allocation4], 1
    %797 = vsyncpa %s796, 1

</llo_original>
